<compile_context>
chip_gen: v7x
topology: tpu7x:2x2x1
jax: 0.10.0
libtpu: 0.0.40
codegen_flags: <defaults>
</compile_context>

<pallas_src>
import functools

import jax
import jax.numpy as jnp
from jax.experimental import pallas as pl
from jax.experimental.pallas import tpu as pltpu

PAD = 2  # max conv padding (branch 2); every sample carries 2 zero halo lanes per side


def inception_kernel(x_ref, whead_ref, b1a_ref, b2a_ref, wcomb_ref, bcomb_ref,
                     o_ref, *, c1, c2, L, Lp, valid_w):
    xz = x_ref[...]                                   # (in_c, W) f32, zero halo/pad lanes
    W = xz.shape[-1]

    # Lane validity: within the first valid_w lanes, offsets [PAD, PAD+L) of each
    # Lp-wide sample hold real data; everything else is halo / chunk padding.
    lane = jax.lax.broadcasted_iota(jnp.int32, (1, W), 1)
    off = lane % Lp
    valid = jnp.logical_and(lane < valid_w,
                            jnp.logical_and(off >= PAD, off < PAD + L))

    # (1) fused 1x1 reduce convs of branch-1 and branch-2: one MXU push.
    head = jnp.dot(whead_ref[...], xz, preferred_element_type=jnp.float32)  # (c1+c2, W)
    p1a = jnp.where(valid, head[0:c1] + b1a_ref[...], 0.0)        # re-zero halo lanes
    p2a = jnp.where(valid, head[c1:c1 + c2] + b2a_ref[...], 0.0)

    # MaxPool1d(k=3, s=1, pad=1): PyTorch pads with -inf; re-zero halo before the conv.
    xm = jnp.where(valid, xz, -jnp.inf)
    ninf = jnp.full((xm.shape[0], 1), -jnp.inf, xm.dtype)
    xmp = jnp.concatenate([ninf, xm, ninf], axis=1)               # (in_c, W+2)
    pooled = jnp.maximum(jnp.maximum(xmp[:, 0:W], xmp[:, 1:W + 1]), xmp[:, 2:W + 2])
    pooled = jnp.where(valid, pooled, 0.0)

    def taps(a, K, p):
        # K shifted copies of `a`; the per-sample zero halo realizes the conv's
        # zero padding, the extra p columns only keep static slices in-bounds
        # (their values feed halo outputs, discarded by the wrapper).
        z = jnp.zeros((a.shape[0], p), a.dtype)
        ap = jnp.concatenate([z, a, z], axis=1)                   # (Cin, W+2p)
        return [ap[:, k:k + W] for k in range(K)]

    # (2) block-diagonal matmul: branch-1 k3 conv, branch-2 k5 conv, branch-3 k3
    #     conv and the 1x1 shortcut, all in one MXU push over stacked activations.
    stacked = jnp.concatenate(
        taps(p1a, 3, 1) + taps(p2a, 5, 2) + taps(pooled, 3, 1) + [xz], axis=0)
    out = jnp.dot(wcomb_ref[...], stacked,
                  preferred_element_type=jnp.float32) + bcomb_ref[...]
    o_ref[...] = out.astype(o_ref.dtype)                          # one full-tile store


def _round_up(v, m):
    return -(-v // m) * m


def _pick_tb(N, Lp, max_lanes=2048):
    """Samples per grid step.  Chunks are padded to a multiple of 128 lanes, so
    any divisor of N is layout-legal; prefer the widest chunk within the lane
    budget, keeping >=2 grid steps only when each step is still lane-dense."""
    divs = [d for d in range(1, N + 1) if N % d == 0 and d * Lp <= max_lanes]
    if not divs:
        return 1
    multi = [d for d in divs if N // d >= 2 and d * Lp >= 512]
    return max(multi) if multi else max(divs)


def inception_pallas(x, raw, *, c1, c2, c3, out_C, tb=None):
    N, in_c, L = x.shape
    assert c1 + c2 + c3 == out_C, "out += short_cut(x) requires c1 + c2 + c3 == out_C"
    Lp = L + 2 * PAD
    if tb is None:
        tb = _pick_tb(N, Lp)
    assert N % tb == 0
    n_chunks = N // tb
    Wv = tb * Lp                      # valid lanes per chunk
    Wc = _round_up(Wv, 128)           # lane-dense chunk width (unmasked stores)

    # ---- layout plumbing (XLA side, outside the kernel) ----
    # (N, in_c, L) -> (in_c, N, Lp) halo-padded -> chunks of tb samples padded to Wc lanes.
    xt = jnp.transpose(x, (1, 0, 2)).astype(jnp.float32)          # (in_c, N, L)
    xt = jnp.pad(xt, ((0, 0), (0, 0), (PAD, PAD)))                # (in_c, N, Lp)
    xt = xt.reshape(in_c, n_chunks, Wv)
    xt = jnp.pad(xt, ((0, 0), (0, 0), (0, Wc - Wv)))
    x_flat = xt.reshape(in_c, n_chunks * Wc)

    # ---- weight repacking ----
    # Stack the two 1x1 reduce convs into one (c1+c2, in_c) weight.
    whead = jnp.concatenate([raw["w1a"][:, :, 0], raw["w2a"][:, :, 0]], axis=0)
    b1a = raw["b1a"][:, None]
    b2a = raw["b2a"][:, None]
    # K-tap conv weights flattened to (Cout, K*Cin): column k*Cin + i == w[:, i, k].
    w1b = jnp.transpose(raw["w1b"], (0, 2, 1)).reshape(c1, 3 * c1)
    w2b = jnp.transpose(raw["w2b"], (0, 2, 1)).reshape(c2, 5 * c2)
    w3 = jnp.transpose(raw["w3"], (0, 2, 1)).reshape(c3, 3 * in_c)
    # Shortcut: 1x1 conv weight, or identity when in_c == out_C (nn.Sequential()).
    wsc = (raw["wsc"][:, :, 0] if raw.get("wsc") is not None
           else jnp.eye(out_C, in_c, dtype=jnp.float32))

    # Block-diagonal combined weight: [branch1 k3 | branch2 k5 | branch3 k3 | shortcut].
    n1, n2, n3 = 3 * c1, 5 * c2, 3 * in_c
    R = n1 + n2 + n3 + in_c
    wcomb = jnp.zeros((out_C, R), jnp.float32)
    wcomb = wcomb.at[0:c1, 0:n1].set(w1b)
    wcomb = wcomb.at[c1:c1 + c2, n1:n1 + n2].set(w2b)
    wcomb = wcomb.at[c1 + c2:, n1 + n2:n1 + n2 + n3].set(w3)
    wcomb = wcomb.at[:, n1 + n2 + n3:].set(wsc)
    bcomb = jnp.concatenate([raw["b1b"], raw["b2b"], raw["b3"]], axis=0)[:, None]
    # TODO(synk): cast x_flat / weights to bfloat16 (f32 accumulate) on v6e/v7x once the
    # accuracy budget allows; kept f32 to satisfy the 1e-4 check against the reference.

    full = lambda a: pl.BlockSpec(a.shape, lambda n: (0,) * a.ndim)
    kernel = functools.partial(inception_kernel, c1=c1, c2=c2, L=L, Lp=Lp, valid_w=Wv)

    out_flat = pl.pallas_call(
        kernel,
        out_shape=jax.ShapeDtypeStruct((out_C, n_chunks * Wc), jnp.float32),
        grid_spec=pltpu.PrefetchScalarGridSpec(
            num_scalar_prefetch=0,
            grid=(n_chunks,),
            in_specs=[pl.BlockSpec((in_c, Wc), lambda n: (0, n)),
                      full(whead), full(b1a), full(b2a), full(wcomb), full(bcomb)],
            out_specs=pl.BlockSpec((out_C, Wc), lambda n: (0, n)),
        ),
        compiler_params=pltpu.CompilerParams(dimension_semantics=("parallel",)),
    )(x_flat, whead, b1a, b2a, wcomb, bcomb)

    # (out_C, n_chunks*Wc) -> (N, out_C, L): drop chunk padding and per-sample halo.
    out = out_flat.reshape(out_C, n_chunks, Wc)[:, :, :Wv]
    out = out.reshape(out_C, N, Lp)[:, :, PAD:PAD + L]
    return jnp.transpose(out, (1, 0, 2))


# ----------------------------- reference (plain JAX) -----------------------------
def _conv1d_ref(x, w_oik, b, pad):
    out = jax.lax.conv_general_dilated(
        x, w_oik, window_strides=(1,), padding=[(pad, pad)],
        dimension_numbers=("NCH", "OIH", "NCH"),
        precision=jax.lax.Precision.HIGHEST)
    if b is not None:
        out = out + b[None, :, None]
    return out


def _maxpool_ref(x):
    N, C, L = x.shape
    neg = jnp.full((N, C, 1), -jnp.inf, x.dtype)
    xp = jnp.concatenate([neg, x, neg], axis=-1)
    return jnp.maximum(jnp.maximum(xp[..., 0:L], xp[..., 1:L + 1]), xp[..., 2:L + 2])


def inception_ref(x, raw):
    p1 = _conv1d_ref(_conv1d_ref(x, raw["w1a"], raw["b1a"], 0), raw["w1b"], raw["b1b"], 1)
    p2 = _conv1d_ref(_conv1d_ref(x, raw["w2a"], raw["b2a"], 0), raw["w2b"], raw["b2b"], 2)
    p3 = _conv1d_ref(_maxpool_ref(x), raw["w3"], raw["b3"], 1)
    sc = _conv1d_ref(x, raw["wsc"], None, 0)
    return jnp.concatenate([p1, p2, p3], axis=1) + sc


# ----------------------------- setup -----------------------------
if __name__ == "__main__":
    # Small shapes consistent with the module: x is (N, in_c, L).
    N, in_c, L = 2, 4, 16
    c1, c2, c3 = 8, 8, 8
    out_C = c1 + c2 + c3          # required for the `out += short_cut(x)` in-place add

    key = jax.random.PRNGKey(0)
    ks = jax.random.split(key, 16)
    f32 = jnp.float32
    init = lambda k, shape, scale=0.1: (scale * jax.random.normal(k, shape)).astype(f32)

    # Raw PyTorch-convention weights: Conv1d weight is (C_out, C_in, K), bias (C_out,).
    raw = {
        "w1a": init(ks[0], (c1, in_c, 1)), "b1a": init(ks[1], (c1,)),
        "w1b": init(ks[2], (c1, c1, 3)),   "b1b": init(ks[3], (c1,)),
        "w2a": init(ks[4], (c2, in_c, 1)), "b2a": init(ks[5], (c2,)),
        "w2b": init(ks[6], (c2, c2, 5)),   "b2b": init(ks[7], (c2,)),
        "w3":  init(ks[8], (c3, in_c, 3)), "b3":  init(ks[9], (c3,)),
        "wsc": init(ks[10], (out_C, in_c, 1)),
    }
    # conv_linear exists in __init__ but is unused by forward(); parity-init only.
    _unused_conv_linear = (init(ks[11], (out_C, c1 + c2 + c3, 1)), init(ks[12], (out_C,)))

    x = jax.random.normal(ks[13], (N, in_c, L)).astype(f32)

    out = jax.block_until_ready(inception_pallas(x, raw, c1=c1, c2=c2, c3=c3, out_C=out_C))
    ref = jax.block_until_ready(inception_ref(x, raw))

    assert out.shape == (N, out_C, L), out.shape
    max_err = float(jnp.max(jnp.abs(out - ref)))
    assert jnp.allclose(out, ref, atol=1e-4, rtol=1e-4), max_err

    print("KERNEL_OK")
</pallas_src>

<mosaic_0001>
module attributes {stable_mosaic.version = 11 : i64} {
  func.func @inception_kernel(%arg0: i32, %arg1: memref<4x128xf32, #tpu.memory_space<vmem>>, %arg2: memref<16x4xf32, #tpu.memory_space<vmem>>, %arg3: memref<8x1xf32, #tpu.memory_space<vmem>>, %arg4: memref<8x1xf32, #tpu.memory_space<vmem>>, %arg5: memref<24x80xf32, #tpu.memory_space<vmem>>, %arg6: memref<24x1xf32, #tpu.memory_space<vmem>>, %arg7: memref<24x128xf32, #tpu.memory_space<vmem>>) attributes {dimension_semantics = [#tpu.dimension_semantics<parallel>], iteration_bounds = array<i64: 1>, scalar_prefetch = 0 : i64, scratch_operands = 0 : i64, tpu.core_type = #tpu.core_type<tc>, window_params = [{transform_indices = @transform_0, window_bounds = array<i64: 4, 128>}, {pipeline_mode = #tpu.pipeline_mode<synchronous>, transform_indices = @transform_1, window_bounds = array<i64: 16, 4>}, {pipeline_mode = #tpu.pipeline_mode<synchronous>, transform_indices = @transform_2, window_bounds = array<i64: 8, 1>}, {pipeline_mode = #tpu.pipeline_mode<synchronous>, transform_indices = @transform_3, window_bounds = array<i64: 8, 1>}, {pipeline_mode = #tpu.pipeline_mode<synchronous>, transform_indices = @transform_4, window_bounds = array<i64: 24, 80>}, {pipeline_mode = #tpu.pipeline_mode<synchronous>, transform_indices = @transform_5, window_bounds = array<i64: 24, 1>}, {transform_indices = @transform_6, window_bounds = array<i64: 24, 128>}]} {
    %c0 = arith.constant 0 : index
    %c0_0 = arith.constant 0 : index
    %0 = vector.load %arg1[%c0, %c0_0] : memref<4x128xf32, #tpu.memory_space<vmem>>, vector<4x128xf32>
    %1 = tpu.iota {dimensions = array<i32: 1>} : vector<1x128xi32>
    %c20_i32 = arith.constant 20 : i32
    %c0_i32 = arith.constant 0 : i32
    %2 = arith.cmpi eq, %c20_i32, %c0_i32 : i32
    %c1_i32 = arith.constant 1 : i32
    %3 = arith.select %2, %c1_i32, %c20_i32 : i32
    %4 = vector.broadcast %3 : i32 to vector<1x128xi32>
    %5 = arith.remsi %1, %4 : vector<1x128xi32>
    %c0_i32_1 = arith.constant 0 : i32
    %6 = vector.broadcast %c0_i32_1 : i32 to vector<1x128xi32>
    %7 = arith.cmpi ne, %5, %6 : vector<1x128xi32>
    %c0_i32_2 = arith.constant 0 : i32
    %8 = vector.broadcast %c0_i32_2 : i32 to vector<1x128xi32>
    %9 = arith.cmpi slt, %5, %8 : vector<1x128xi32>
    %c0_i32_3 = arith.constant 0 : i32
    %10 = arith.cmpi slt, %3, %c0_i32_3 : i32
    %11 = vector.broadcast %10 : i1 to vector<1x128xi1>
    %12 = vector.broadcast %11 : vector<1x128xi1> to vector<1x128xi1>
    %13 = arith.xori %9, %12 : vector<1x128xi1>
    %14 = arith.andi %13, %7 : vector<1x128xi1>
    %15 = vector.broadcast %3 : i32 to vector<1x128xi32>
    %16 = arith.addi %5, %15 : vector<1x128xi32>
    %17 = arith.select %14, %16, %5 : vector<1x128xi1>, vector<1x128xi32>
    %c40_i32 = arith.constant 40 : i32
    %18 = vector.broadcast %c40_i32 : i32 to vector<1x128xi32>
    %19 = arith.cmpi slt, %1, %18 : vector<1x128xi32>
    %c2_i32 = arith.constant 2 : i32
    %20 = vector.broadcast %c2_i32 : i32 to vector<1x128xi32>
    %21 = arith.cmpi sge, %17, %20 : vector<1x128xi32>
    %c18_i32 = arith.constant 18 : i32
    %22 = vector.broadcast %c18_i32 : i32 to vector<1x128xi32>
    %23 = arith.cmpi slt, %17, %22 : vector<1x128xi32>
    %24 = arith.andi %21, %23 : vector<1x128xi1>
    %25 = arith.andi %19, %24 : vector<1x128xi1>
    %c0_4 = arith.constant 0 : index
    %c0_5 = arith.constant 0 : index
    %26 = vector.load %arg2[%c0_4, %c0_5] : memref<16x4xf32, #tpu.memory_space<vmem>>, vector<16x4xf32>
    %cst = arith.constant dense<0.000000e+00> : vector<16x128xf32>
    %27 = tpu.matmul %26, %0, %cst {dimension_numbers = #tpu.dot_dimension_numbers<[1], [0], [0], [1], [0, 0, 1, 1], [], []>} : vector<16x4xf32>, vector<4x128xf32>, vector<16x128xf32> -> vector<16x128xf32>
    %28 = vector.extract_strided_slice %27 {offsets = [0, 0], sizes = [8, 128], strides = [1, 1]} : vector<16x128xf32> to vector<8x128xf32>
    %c0_6 = arith.constant 0 : index
    %c0_7 = arith.constant 0 : index
    %29 = vector.load %arg3[%c0_6, %c0_7] : memref<8x1xf32, #tpu.memory_space<vmem>>, vector<8x1xf32>
    %30 = vector.broadcast %29 : vector<8x1xf32> to vector<8x128xf32>
    %31 = arith.addf %28, %30 : vector<8x128xf32>
    %cst_8 = arith.constant 0.000000e+00 : f32
    %32 = vector.shape_cast %25 : vector<1x128xi1> to vector<1x128xi1>
    %33 = vector.broadcast %32 : vector<1x128xi1> to vector<8x128xi1>
    %34 = vector.broadcast %cst_8 : f32 to vector<8x128xf32>
    %35 = arith.select %33, %31, %34 : vector<8x128xi1>, vector<8x128xf32>
    %36 = vector.extract_strided_slice %27 {offsets = [8, 0], sizes = [8, 128], strides = [1, 1]} : vector<16x128xf32> to vector<8x128xf32>
    %c0_9 = arith.constant 0 : index
    %c0_10 = arith.constant 0 : index
    %37 = vector.load %arg4[%c0_9, %c0_10] : memref<8x1xf32, #tpu.memory_space<vmem>>, vector<8x1xf32>
    %38 = vector.broadcast %37 : vector<8x1xf32> to vector<8x128xf32>
    %39 = arith.addf %36, %38 : vector<8x128xf32>
    %cst_11 = arith.constant 0.000000e+00 : f32
    %40 = vector.shape_cast %25 : vector<1x128xi1> to vector<1x128xi1>
    %41 = vector.broadcast %40 : vector<1x128xi1> to vector<8x128xi1>
    %42 = vector.broadcast %cst_11 : f32 to vector<8x128xf32>
    %43 = arith.select %41, %39, %42 : vector<8x128xi1>, vector<8x128xf32>
    %cst_12 = arith.constant 0xFF800000 : f32
    %44 = vector.shape_cast %25 : vector<1x128xi1> to vector<1x128xi1>
    %45 = vector.broadcast %44 : vector<1x128xi1> to vector<4x128xi1>
    %46 = vector.broadcast %cst_12 : f32 to vector<4x128xf32>
    %47 = arith.select %45, %0, %46 : vector<4x128xi1>, vector<4x128xf32>
    %cst_13 = arith.constant 0xFF800000 : f32
    %48 = vector.broadcast %cst_13 : f32 to vector<4x1xf32>
    %49 = tpu.concatenate %48, %47, %48 in 1 : vector<4x1xf32>, vector<4x128xf32>, vector<4x1xf32> -> vector<4x130xf32>
    %50 = vector.extract_strided_slice %49 {offsets = [0, 0], sizes = [4, 128], strides = [1, 1]} : vector<4x130xf32> to vector<4x128xf32>
    %51 = vector.extract_strided_slice %49 {offsets = [0, 1], sizes = [4, 128], strides = [1, 1]} : vector<4x130xf32> to vector<4x128xf32>
    %52 = arith.maximumf %50, %51 : vector<4x128xf32>
    %53 = vector.extract_strided_slice %49 {offsets = [0, 2], sizes = [4, 128], strides = [1, 1]} : vector<4x130xf32> to vector<4x128xf32>
    %54 = arith.maximumf %52, %53 : vector<4x128xf32>
    %cst_14 = arith.constant 0.000000e+00 : f32
    %55 = vector.shape_cast %25 : vector<1x128xi1> to vector<1x128xi1>
    %56 = vector.broadcast %55 : vector<1x128xi1> to vector<4x128xi1>
    %57 = vector.broadcast %cst_14 : f32 to vector<4x128xf32>
    %58 = arith.select %56, %54, %57 : vector<4x128xi1>, vector<4x128xf32>
    %cst_15 = arith.constant 0.000000e+00 : f32
    %59 = vector.broadcast %cst_15 : f32 to vector<8x1xf32>
    %60 = tpu.concatenate %59, %35, %59 in 1 : vector<8x1xf32>, vector<8x128xf32>, vector<8x1xf32> -> vector<8x130xf32>
    %61 = vector.extract_strided_slice %60 {offsets = [0, 0], sizes = [8, 128], strides = [1, 1]} : vector<8x130xf32> to vector<8x128xf32>
    %62 = vector.extract_strided_slice %60 {offsets = [0, 1], sizes = [8, 128], strides = [1, 1]} : vector<8x130xf32> to vector<8x128xf32>
    %63 = vector.extract_strided_slice %60 {offsets = [0, 2], sizes = [8, 128], strides = [1, 1]} : vector<8x130xf32> to vector<8x128xf32>
    %cst_16 = arith.constant 0.000000e+00 : f32
    %64 = vector.broadcast %cst_16 : f32 to vector<8x2xf32>
    %65 = tpu.concatenate %64, %43, %64 in 1 : vector<8x2xf32>, vector<8x128xf32>, vector<8x2xf32> -> vector<8x132xf32>
    %66 = vector.extract_strided_slice %65 {offsets = [0, 0], sizes = [8, 128], strides = [1, 1]} : vector<8x132xf32> to vector<8x128xf32>
    %67 = vector.extract_strided_slice %65 {offsets = [0, 1], sizes = [8, 128], strides = [1, 1]} : vector<8x132xf32> to vector<8x128xf32>
    %68 = vector.extract_strided_slice %65 {offsets = [0, 2], sizes = [8, 128], strides = [1, 1]} : vector<8x132xf32> to vector<8x128xf32>
    %69 = vector.extract_strided_slice %65 {offsets = [0, 3], sizes = [8, 128], strides = [1, 1]} : vector<8x132xf32> to vector<8x128xf32>
    %70 = vector.extract_strided_slice %65 {offsets = [0, 4], sizes = [8, 128], strides = [1, 1]} : vector<8x132xf32> to vector<8x128xf32>
    %cst_17 = arith.constant 0.000000e+00 : f32
    %71 = vector.broadcast %cst_17 : f32 to vector<4x1xf32>
    %72 = tpu.concatenate %71, %58, %71 in 1 : vector<4x1xf32>, vector<4x128xf32>, vector<4x1xf32> -> vector<4x130xf32>
    %73 = vector.extract_strided_slice %72 {offsets = [0, 0], sizes = [4, 128], strides = [1, 1]} : vector<4x130xf32> to vector<4x128xf32>
    %74 = vector.extract_strided_slice %72 {offsets = [0, 1], sizes = [4, 128], strides = [1, 1]} : vector<4x130xf32> to vector<4x128xf32>
    %75 = vector.extract_strided_slice %72 {offsets = [0, 2], sizes = [4, 128], strides = [1, 1]} : vector<4x130xf32> to vector<4x128xf32>
    %76 = tpu.concatenate %61, %62, %63, %66, %67, %68, %69, %70, %73, %74, %75, %0 in 0 : vector<8x128xf32>, vector<8x128xf32>, vector<8x128xf32>, vector<8x128xf32>, vector<8x128xf32>, vector<8x128xf32>, vector<8x128xf32>, vector<8x128xf32>, vector<4x128xf32>, vector<4x128xf32>, vector<4x128xf32>, vector<4x128xf32> -> vector<80x128xf32>
    %c0_18 = arith.constant 0 : index
    %c0_19 = arith.constant 0 : index
    %77 = vector.load %arg5[%c0_18, %c0_19] : memref<24x80xf32, #tpu.memory_space<vmem>>, vector<24x80xf32>
    %cst_20 = arith.constant dense<0.000000e+00> : vector<24x128xf32>
    %78 = tpu.matmul %77, %76, %cst_20 {dimension_numbers = #tpu.dot_dimension_numbers<[1], [0], [0], [1], [0, 0, 1, 1], [], []>} : vector<24x80xf32>, vector<80x128xf32>, vector<24x128xf32> -> vector<24x128xf32>
    %c0_21 = arith.constant 0 : index
    %c0_22 = arith.constant 0 : index
    %79 = vector.load %arg6[%c0_21, %c0_22] : memref<24x1xf32, #tpu.memory_space<vmem>>, vector<24x1xf32>
    %80 = vector.broadcast %79 : vector<24x1xf32> to vector<24x128xf32>
    %81 = arith.addf %78, %80 : vector<24x128xf32>
    %c0_23 = arith.constant 0 : index
    %c0_24 = arith.constant 0 : index
    %82 = vector.load %arg7[%c0_23, %c0_24] : memref<24x128xf32, #tpu.memory_space<vmem>>, vector<24x128xf32>
    tpu.vector_store %arg7[%c0_23, %c0_24], %81 {strides = array<i32>} : memref<24x128xf32, #tpu.memory_space<vmem>>, vector<24x128xf32>,
    return
  }
  func.func @transform_0(%arg0: i32) -> (i32, i32) {
    %c0_i32 = arith.constant 0 : i32
    %c0_i32_0 = arith.constant 0 : i32
    return %c0_i32, %arg0 : i32, i32
  }
  func.func @transform_1(%arg0: i32) -> (i32, i32) {
    %c0_i32 = arith.constant 0 : i32
    %c0_i32_0 = arith.constant 0 : i32
    %c0_i32_1 = arith.constant 0 : i32
    return %c0_i32, %c0_i32_0 : i32, i32
  }
  func.func @transform_2(%arg0: i32) -> (i32, i32) {
    %c0_i32 = arith.constant 0 : i32
    %c0_i32_0 = arith.constant 0 : i32
    %c0_i32_1 = arith.constant 0 : i32
    return %c0_i32, %c0_i32_0 : i32, i32
  }
  func.func @transform_3(%arg0: i32) -> (i32, i32) {
    %c0_i32 = arith.constant 0 : i32
    %c0_i32_0 = arith.constant 0 : i32
    %c0_i32_1 = arith.constant 0 : i32
    return %c0_i32, %c0_i32_0 : i32, i32
  }
  func.func @transform_4(%arg0: i32) -> (i32, i32) {
    %c0_i32 = arith.constant 0 : i32
    %c0_i32_0 = arith.constant 0 : i32
    %c0_i32_1 = arith.constant 0 : i32
    return %c0_i32, %c0_i32_0 : i32, i32
  }
  func.func @transform_5(%arg0: i32) -> (i32, i32) {
    %c0_i32 = arith.constant 0 : i32
    %c0_i32_0 = arith.constant 0 : i32
    %c0_i32_1 = arith.constant 0 : i32
    return %c0_i32, %c0_i32_0 : i32, i32
  }
  func.func @transform_6(%arg0: i32) -> (i32, i32) {
    %c0_i32 = arith.constant 0 : i32
    %c0_i32_0 = arith.constant 0 : i32
    return %c0_i32, %arg0 : i32, i32
  }
}

</mosaic_0001>

<llo_original>
// kernel: tpu_custom_call.1
$region0: #{tpu_custom_call.1}
  #allocation0 [shape = 'u32[]', space=smem, size = 0x4, offset = 0x4, fixed_abs, tag = 'smem constant byte address 0x4 - core index']
  #allocation1 [shape = 'u32[144,128]{1,0:T(1,128)}', space=vmem, size = 0x12000, scoped, tag = 'internal scratch']
  %s0 = inlined_call_operand.vmem [shape: f32[4,128], index: 0, kind: input, shape index: {}]
  %s1 = inlined_call_operand.vmem [shape: f32[16,4], index: 1, kind: input, shape index: {}]
  %s2 = inlined_call_operand.vmem [shape: f32[8,1], index: 2, kind: input, shape index: {}]
  %s3 = inlined_call_operand.vmem [shape: f32[8,1], index: 3, kind: input, shape index: {}]
  %s4 = inlined_call_operand.vmem [shape: f32[24,80], index: 4, kind: input, shape index: {}]
  %s5 = inlined_call_operand.vmem [shape: f32[24,1], index: 5, kind: input, shape index: {}]
  %s6 = inlined_call_operand.hbm [shape: f32[24,128], index: 6, kind: output, shape index: {}]
  %s7 = sld [smem:[#allocation0]]
  $region34: #{tpu_custom_call.1} parent=0
    _
  %s9 = ssub.s32 1, %s7
  %s10 = scalar_select 0, %s9, %s7
  $region1: #{tpu_custom_call.1} parent=0
    #allocation2 [shape = 'u8[12288]{0}', space=vmem, size = 0x3000, scoped, tag = 'output window, operand 0, single buffered']
    #allocation3 [shape = 's32[1]{0}', space=sflag, size = 0x4, scoped, tag = 'scoped memory for tpu_custom_call.1']
    %11 = vsyncpa [#allocation3], 0
    // Predicated region
    $region2: #{tpu_custom_call.1} parent=1 // pred_check
      _
    $region3: #{tpu_custom_call.1} parent=1 // pred_check_branch
      %13 = sbr.rel (0) target = $region5
    $region4: #{tpu_custom_call.1} parent=1 // pred_region
      _
    $region5: #{tpu_custom_call.1} parent=1 // pred_fallthru
      _
    // Predicated region
    $region6: #{tpu_custom_call.1} parent=1 // pred_check
      _
    $region7: #{tpu_custom_call.1} parent=1 // pred_check_branch
      %15 = sbr.rel (0) target = $region9
    $region8: #{tpu_custom_call.1} parent=1 // pred_region
      _
    $region9: #{tpu_custom_call.1} parent=1 // pred_fallthru
      _
    // Predicated region
    $region10: #{tpu_custom_call.1} parent=1 // pred_check
      _
    $region11: #{tpu_custom_call.1} parent=1 // pred_check_branch
      %17 = sbr.rel (0) target = $region13
    $region12: #{tpu_custom_call.1} parent=1 // pred_region
      _
    $region13: #{tpu_custom_call.1} parent=1 // pred_fallthru
      _
    // Predicated region
    $region14: #{tpu_custom_call.1} parent=1 // pred_check
      _
    $region15: #{tpu_custom_call.1} parent=1 // pred_check_branch
      %19 = sbr.rel (0) target = $region17
    $region16: #{tpu_custom_call.1} parent=1 // pred_region
      _
    $region17: #{tpu_custom_call.1} parent=1 // pred_fallthru
      _
    // Predicated region
    $region18: #{tpu_custom_call.1} parent=1 // pred_check
      _
    $region19: #{tpu_custom_call.1} parent=1 // pred_check_branch
      %21 = sbr.rel (0) target = $region21
    $region20: #{tpu_custom_call.1} parent=1 // pred_region
      _
    $region21: #{tpu_custom_call.1} parent=1 // pred_fallthru
      _
    // Predicated region
    $region22: #{tpu_custom_call.1} parent=1 // pred_check
      _
    $region23: #{tpu_custom_call.1} parent=1 // pred_check_branch
      %23 = sbr.rel (0) target = $region25
    $region24: #{tpu_custom_call.1} parent=1 // pred_region
      _
    $region25: #{tpu_custom_call.1} parent=1 // pred_fallthru
      _
    %v24 = vld [vmem:[%s0] sm:$0xf]
    %v25 = vlaneseq
    %v26 = vand.u32 %v25, 127
    %vm27 = vcmp.lt.s32.totalorder %v26, 0
    %v28 = vsub.s32 0, %v26
    %v29 = vsel %vm27, %v28, %v26
    %v30 = vmul.u32.u64.compose %v29, 3435973837
    %v31 = vextract.low.u32 %v30
    %v32 = vextract.high.u32 %v30
    %v33 = vshrl.u32 %v32, 4
    %v34 = vmul.u32 %v33, 20
    %v35 = vsub.s32 %v29, %v34
    %v36 = vsub.s32 0, %v35
    %v37 = vsel %vm27, %v36, %v35
    %vm38 = vcmp.ne.s32.totalorder %v37, 0
    %vm39 = vcmp.lt.s32.totalorder %v37, 0
    %vm40 = vmand %vm39, %vm38
    %v41 = vadd.s32 %v37, 20
    %v42 = vsel %vm40, %v41, %v37
    %vm43 = vcmp.lt.s32.totalorder %v26, 40
    %vm44 = vcmp.ge.s32.totalorder %v42, 2
    %vm45 = vcmp.lt.s32.totalorder %v42, 18
    %vm46 = vmand %vm44, %vm45
    %vm47 = vmand %vm43, %vm46
    %v48 = vld [vmem:[%s1] sm:$0xff]
    %v49 = vld [vmem:[%s1 + $0x8] sm:$0xff]
    %vm50 = vcmask 31744
    %v52 = vsel %vm50, %v48, 0
    %v55 = vsel %vm50, %v49, 0
    %vm57 = vcmask 1043456
    %v59 = vsel %vm57, %v24, 0
    %61 = vmatprep.subr.mxu0 0.0
    %62 = vmatpush1.msra.mxu0 %v59
    %63 = vmatprep.subr.mxu0 0.0
    %64 = vmatpush1.msra.mxu0 0.0
    %65 = vmatprep.subr.mxu0 0.0
    %66 = vmatpush1.msra.mxu0 0.0
    %67 = vmatprep.subr.mxu0 0.0
    %68 = vmatpush1.msra.mxu0 0.0
    %69 = vmatprep.subr.mxu0 0.0
    %70 = vmatpush1.msra.mxu0 0.0
    %71 = vmatprep.subr.mxu0 0.0
    %72 = vmatpush1.msra.mxu0 0.0
    %73 = vmatprep.subr.mxu0 0.0
    %74 = vmatpush1.msra.mxu0 0.0
    %75 = vmatprep.subr.mxu0 0.0
    %76 = vmatpush1.msra.mxu0 0.0
    %77 = vmatprep.subr.mxu0 0.0
    %78 = vmatpush1.msra.mxu0 0.0
    %79 = vmatprep.subr.mxu0 0.0
    %80 = vmatpush1.msra.mxu0 0.0
    %81 = vmatprep.subr.mxu0 0.0
    %82 = vmatpush1.msra.mxu0 0.0
    %83 = vmatprep.subr.mxu0 0.0
    %84 = vmatpush1.msra.mxu0 0.0
    %85 = vmatprep.subr.mxu0 0.0
    %86 = vmatpush1.msra.mxu0 0.0
    %87 = vmatprep.subr.mxu0 0.0
    %88 = vmatpush1.msra.mxu0 0.0
    %89 = vmatprep.subr.mxu0 0.0
    %90 = vmatpush1.msra.mxu0 0.0
    %91 = vmatprep.subr.mxu0 0.0
    %92 = vmatpush1.msra.mxu0 0.0
    %93 = vmatprep.subr.mxu0 0.0
    %94 = vmatpush1.msra.mxu0 0.0
    %95 = vmatprep.subr.mxu0 0.0
    %96 = vmatpush1.msra.mxu0 0.0
    %97 = vmatprep.subr.mxu0 0.0
    %98 = vmatpush1.msra.mxu0 0.0
    %99 = vmatprep.subr.mxu0 0.0
    %100 = vmatpush1.msra.mxu0 0.0
    %101 = vmatprep.subr.mxu0 0.0
    %102 = vmatpush1.msra.mxu0 0.0
    %103 = vmatprep.subr.mxu0 0.0
    %104 = vmatpush1.msra.mxu0 0.0
    %105 = vmatprep.subr.mxu0 0.0
    %106 = vmatpush1.msra.mxu0 0.0
    %107 = vmatprep.subr.mxu0 0.0
    %108 = vmatpush1.msra.mxu0 0.0
    %109 = vmatprep.subr.mxu0 0.0
    %110 = vmatpush1.msra.mxu0 0.0
    %111 = vmatprep.subr.mxu0 0.0
    %112 = vmatpush1.msra.mxu0 0.0
    %113 = vmatprep.subr.mxu0 0.0
    %114 = vmatpush1.msra.mxu0 0.0
    %115 = vmatprep.subr.mxu0 0.0
    %116 = vmatpush1.msra.mxu0 0.0
    %117 = vmatprep.subr.mxu0 0.0
    %118 = vmatpush1.msra.mxu0 0.0
    %119 = vmatprep.subr.mxu0 0.0
    %120 = vmatpush1.msra.mxu0 0.0
    %121 = vmatprep.subr.mxu0 0.0
    %122 = vmatpush1.msra.mxu0 0.0
    %123 = vmatprep.subr.mxu0 0.0
    %124 = vmatpush1.msra.mxu0 0.0
    %125 = vmatprep.mubr.f32.mxu0 0.0
    %126 = vmatmul.mubr.f32.gmra.mrb[0].mxu0 %v52
    %v127 = vpop.f32.mrb[0].mxu0
    %v128 = vadd.f32 0.0, %v127
    %v129 = vpop.f32.mrb[0].mxu0
    %130 = vmatprep.mubr.f32.mxu0 0.0
    %131 = vmatmul.mubr.f32.gmra.mrb[0].mxu0 %v55
    %v132 = vpop.f32.mrb[0].mxu0
    %v133 = vadd.f32 0.0, %v132
    %v134 = vpop.f32.mrb[0].mxu0
    %135 = vdwg.mxu0
    %v136 = vld [vmem:[%s2] sm:$0xff]
    %138 = vset.pattern.permute.xlu0 0
    %139 = vperm.xlu0 %138, %v136
    %v140 = vpop.permute.xlu0 %139
    %v142 = vadd.f32 %v128, %v140
    %v143 = vsel %vm47, 1, 0
    %vm144 = vcmp.eq.s32.totalorder %v143, 1
    %v145 = vsel %vm144, %v142, 0.0
    %v146 = vld [vmem:[%s3] sm:$0xff]
    %148 = vset.pattern.permute.xlu0 0
    %149 = vperm.xlu0 %148, %v146
    %v150 = vpop.permute.xlu0 %149
    %v152 = vadd.f32 %v133, %v150
    %v153 = vsel %vm144, %v152, 0.0
    %v154 = vsel %vm144, %v24, -inf
    %156 = vrot.lane.b32.xlu0 %v154, 1
    %v157 = vpop.permute.xlu0 %156
    %vm159 = vcmask 7168
    %v160 = vsel %vm159, -inf, %v157
    %v161 = vsel %vm159, %v157, -inf
    %164 = vrot.lane.b32.xlu0 %v160, 127
    %v165 = vpop.permute.xlu0 %164
    %166 = vrot.lane.b32.xlu0 %v161, 127
    %v167 = vpop.permute.xlu0 %166
    %vm168 = vcmask 1039360
    %v169 = vsel %vm168, %v165, %v167
    %v171 = vmax.f32 %v160, %v169
    %172 = vrot.lane.b32.xlu0 %v160, 126
    %v173 = vpop.permute.xlu0 %172
    %174 = vrot.lane.b32.xlu0 %v161, 126
    %v175 = vpop.permute.xlu0 %174
    %vm176 = vcmask 1031168
    %v177 = vsel %vm176, %v173, %v175
    %v179 = vmax.f32 %v171, %v177
    %v180 = vsel %vm144, %v179, 0.0
    %182 = vrot.lane.b32.xlu0 %v145, 1
    %v183 = vpop.permute.xlu0 %182
    %v185 = vsel %vm159, 0.0, %v183
    %v186 = vsel %vm159, %v183, 0.0
    %188 = vrot.lane.b32.xlu0 %v153, 2
    %v189 = vpop.permute.xlu0 %188
    %vm191 = vcmask 15360
    %v192 = vsel %vm191, 0.0, %v189
    %v193 = vsel %vm191, %v189, 0.0
    %195 = vrot.lane.b32.xlu0 %v180, 1
    %v196 = vpop.permute.xlu0 %195
    %v198 = vsel %vm159, 0.0, %v196
    %v199 = vsel %vm159, %v196, 0.0
    %202 = vrot.lane.b32.xlu0 %v185, 127
    %v203 = vpop.permute.xlu0 %202
    %204 = vrot.lane.b32.xlu0 %v186, 127
    %v205 = vpop.permute.xlu0 %204
    %v206 = vsel %vm168, %v203, %v205
    %208 = vrot.lane.b32.xlu0 %v185, 126
    %v209 = vpop.permute.xlu0 %208
    %210 = vrot.lane.b32.xlu0 %v186, 126
    %v211 = vpop.permute.xlu0 %210
    %v212 = vsel %vm176, %v209, %v211
    %216 = vrot.lane.b32.xlu0 %v192, 127
    %v217 = vpop.permute.xlu0 %216
    %218 = vrot.lane.b32.xlu0 %v193, 127
    %v219 = vpop.permute.xlu0 %218
    %v220 = vsel %vm168, %v217, %v219
    %222 = vrot.lane.b32.xlu0 %v192, 126
    %v223 = vpop.permute.xlu0 %222
    %224 = vrot.lane.b32.xlu0 %v193, 126
    %v225 = vpop.permute.xlu0 %224
    %v226 = vsel %vm176, %v223, %v225
    %228 = vrot.lane.b32.xlu0 %v192, 125
    %v229 = vpop.permute.xlu0 %228
    %230 = vrot.lane.b32.xlu0 %v193, 125
    %v231 = vpop.permute.xlu0 %230
    %vm232 = vcmask 1022976
    %v233 = vsel %vm232, %v229, %v231
    %235 = vrot.lane.b32.xlu0 %v192, 124
    %v236 = vpop.permute.xlu0 %235
    %237 = vrot.lane.b32.xlu0 %v193, 124
    %v238 = vpop.permute.xlu0 %237
    %vm239 = vcmask 1014784
    %v240 = vsel %vm239, %v236, %v238
    %v244 = vrot.slane %v198, 4
    %v245 = vrot.slane %v199, 4
    %246 = vrot.lane.b32.xlu0 %v244, 127
    %v247 = vpop.permute.xlu0 %246
    %248 = vrot.lane.b32.xlu0 %v245, 127
    %v249 = vpop.permute.xlu0 %248
    %v250 = vsel %vm168, %v247, %v249
    %252 = vrot.lane.b32.xlu0 %v198, 126
    %v253 = vpop.permute.xlu0 %252
    %254 = vrot.lane.b32.xlu0 %v199, 126
    %v255 = vpop.permute.xlu0 %254
    %v256 = vsel %vm176, %v253, %v255
    %v258 = vrot.slane %v24, 4
    %v260 = vsel %vm57, %v198, %v250
    %v261 = vsel %vm57, %v256, %v258
    %v262 = vld [vmem:[%s4] sm:$0xff]
    %v263 = vld [vmem:[%s4 + $0x8] sm:$0xff]
    %v264 = vld [vmem:[%s4 + $0x10] sm:$0xff]
    %v265 = vld [vmem:[%s5] sm:$0xff]
    %v266 = vld [vmem:[%s5 + $0x8] sm:$0xff]
    %v267 = vld [vmem:[%s5 + $0x10] sm:$0xff]
    %269 = vset.pattern.permute.xlu0 0
    %270 = vperm.xlu0 %269, %v265
    %v271 = vpop.permute.xlu0 %270
    %274 = vset.pattern.permute.xlu0 0
    %275 = vperm.xlu0 %274, %v266
    %v276 = vpop.permute.xlu0 %275
    %279 = vset.pattern.permute.xlu0 0
    %280 = vperm.xlu0 %279, %v267
    %v281 = vpop.permute.xlu0 %280
    %vm283 = vcmask 654336
    %v285 = vsel %vm283, %v262, 0
    %v288 = vsel %vm283, %v263, 0
    %v291 = vsel %vm283, %v264, 0
    %293 = vmatprep.subr.mxu0 0.0
    %294 = vmatpush1.msra.mxu0 %v185
    %295 = vmatprep.subr.mxu0 0.0
    %296 = vmatpush1.msra.mxu0 %v206
    %297 = vmatprep.subr.mxu0 0.0
    %298 = vmatpush1.msra.mxu0 %v212
    %299 = vmatprep.subr.mxu0 0.0
    %300 = vmatpush1.msra.mxu0 %v192
    %301 = vmatprep.subr.mxu0 0.0
    %302 = vmatpush1.msra.mxu0 %v220
    %303 = vmatprep.subr.mxu0 0.0
    %304 = vmatpush1.msra.mxu0 %v226
    %305 = vmatprep.subr.mxu0 0.0
    %306 = vmatpush1.msra.mxu0 %v233
    %307 = vmatprep.subr.mxu0 0.0
    %308 = vmatpush1.msra.mxu0 %v240
    %309 = vmatprep.subr.mxu0 0.0
    %310 = vmatpush1.msra.mxu0 %v260
    %311 = vmatprep.subr.mxu0 0.0
    %312 = vmatpush1.msra.mxu0 %v261
    %313 = vmatprep.subr.mxu0 0.0
    %314 = vmatpush1.msra.mxu0 0.0
    %315 = vmatprep.subr.mxu0 0.0
    %316 = vmatpush1.msra.mxu0 0.0
    %317 = vmatprep.subr.mxu0 0.0
    %318 = vmatpush1.msra.mxu0 0.0
    %319 = vmatprep.subr.mxu0 0.0
    %320 = vmatpush1.msra.mxu0 0.0
    %321 = vmatprep.subr.mxu0 0.0
    %322 = vmatpush1.msra.mxu0 0.0
    %323 = vmatprep.subr.mxu0 0.0
    %324 = vmatpush1.msra.mxu0 0.0
    %325 = vmatprep.subr.mxu0 0.0
    %326 = vmatpush1.msra.mxu0 0.0
    %327 = vmatprep.subr.mxu0 0.0
    %328 = vmatpush1.msra.mxu0 0.0
    %329 = vmatprep.subr.mxu0 0.0
    %330 = vmatpush1.msra.mxu0 0.0
    %331 = vmatprep.subr.mxu0 0.0
    %332 = vmatpush1.msra.mxu0 0.0
    %333 = vmatprep.subr.mxu0 0.0
    %334 = vmatpush1.msra.mxu0 0.0
    %335 = vmatprep.subr.mxu0 0.0
    %336 = vmatpush1.msra.mxu0 0.0
    %337 = vmatprep.subr.mxu0 0.0
    %338 = vmatpush1.msra.mxu0 0.0
    %339 = vmatprep.subr.mxu0 0.0
    %340 = vmatpush1.msra.mxu0 0.0
    %341 = vmatprep.subr.mxu0 0.0
    %342 = vmatpush1.msra.mxu0 0.0
    %343 = vmatprep.subr.mxu0 0.0
    %344 = vmatpush1.msra.mxu0 0.0
    %345 = vmatprep.subr.mxu0 0.0
    %346 = vmatpush1.msra.mxu0 0.0
    %347 = vmatprep.subr.mxu0 0.0
    %348 = vmatpush1.msra.mxu0 0.0
    %349 = vmatprep.subr.mxu0 0.0
    %350 = vmatpush1.msra.mxu0 0.0
    %351 = vmatprep.subr.mxu0 0.0
    %352 = vmatpush1.msra.mxu0 0.0
    %353 = vmatprep.subr.mxu0 0.0
    %354 = vmatpush1.msra.mxu0 0.0
    %355 = vmatprep.subr.mxu0 0.0
    %356 = vmatpush1.msra.mxu0 0.0
    %357 = vmatprep.mubr.f32.mxu0 0.0
    %358 = vmatmul.mubr.f32.gmra.mrb[0].mxu0 %v285
    %v359 = vpop.f32.mrb[0].mxu0
    %v360 = vadd.f32 %v271, %v359
    %v361 = vpop.f32.mrb[0].mxu0
    %362 = vmatprep.mubr.f32.mxu0 0.0
    %363 = vmatmul.mubr.f32.gmra.mrb[0].mxu0 %v288
    %v364 = vpop.f32.mrb[0].mxu0
    %v365 = vadd.f32 %v276, %v364
    %v366 = vpop.f32.mrb[0].mxu0
    %367 = vmatprep.mubr.f32.mxu0 0.0
    %368 = vmatmul.mubr.f32.gmra.mrb[0].mxu0 %v291
    %v369 = vpop.f32.mrb[0].mxu0
    %v370 = vadd.f32 %v281, %v369
    %v371 = vpop.f32.mrb[0].mxu0
    %372 = vdwg.mxu0
    %373 = vst [vmem:[#allocation2] sm:$0xff] %v360
    %374 = vst [vmem:[#allocation2 + $0x8] sm:$0xff] %v365
    %375 = vst [vmem:[#allocation2 + $0x10] sm:$0xff] %v370
    // Predicated region
    $region26: #{tpu_custom_call.1} parent=1 // pred_check
      _
    $region27: #{tpu_custom_call.1} parent=1 // pred_check_branch
      %377 = sbr.rel (0) target = $region29
    $region28: #{tpu_custom_call.1} parent=1 // pred_region
      %s379 = ssub.s32 384, 384
      %380 = vsyncadd [#allocation3], %s379
      %s381 = sshll.u32 [#allocation2], 4
      %s382 = int_to_ptr.vmem [resolvable:$true] %s381
      %387 = dma.vmem_to_hbm [thread:$0]  %s382, 384, %s6, [#allocation3], 128, 128, 8
    $region29: #{tpu_custom_call.1} parent=1 // pred_fallthru
      _
    // Predicated region
    $region30: #{tpu_custom_call.1} parent=1 // pred_check
      _
    $region31: #{tpu_custom_call.1} parent=1 // pred_check_branch
      %389 = sbr.rel (0) target = $region33
    $region32: #{tpu_custom_call.1} parent=1 // pred_region
      %390 = dma.done [#allocation3], 384
    $region33: #{tpu_custom_call.1} parent=1 // pred_fallthru
      _
    %391 = vsyncpa [#allocation3], 1

</llo_original>
